<compile_context>
chip_gen: v7x
topology: tpu7x:2x2x1
jax: 0.10.0
libtpu: 0.0.40
codegen_flags: <defaults>
</compile_context>

<pallas_src>
import functools

import jax
import jax.numpy as jnp
import numpy as np
from jax.experimental import pallas as pl
from jax.experimental.pallas import tpu as pltpu

ALPHA = 0.75
GAMMA = 2.0   # kernel exploits gamma == 2.0 -> explicit square, not pow
EPS = 1e-8    # used only by the PyTorch-faithful reference; kernel uses the log-softmax form

_LANES = 128
_SUBLANES = 8
_SAMPLE_ALIGN = _LANES * _SUBLANES  # 1024: keeps each (S, 128) block reshapeable to (S//8, 8, 128)


def _focal_loss_kernel(logits_ref, labels_ref, out_ref, *, n, tile_n, tiles_per_core):
    """One (core, tile) grid step.

    logits_ref: (C, S, 128) f32  - classes on the leading axis, batch dense on (S, 128)
    labels_ref: (S, 128)    i32
    out_ref:    (8, 128)    f32  - per-core partial-sum accumulator, resident across t
    """
    core = pl.program_id(0)
    t = pl.program_id(1)

    @pl.when(t == 0)
    def _init():
        out_ref[...] = jnp.zeros_like(out_ref)

    x = logits_ref[...]                      # (C, S, 128) f32
    lbl = labels_ref[...]                    # (S, 128) i32

    # log-softmax over the class axis (leading, untiled): 8 dense vreg ops per reduce.
    m = jnp.max(x, axis=0)                   # (S, 128)
    e = jnp.exp(x - m[None, ...])            # (C, S, 128) dense EUP work
    denom = jnp.sum(e, axis=0)               # (S, 128)

    # Logit of the true class via iota/compare/select + leading-axis sum.
    # (Deliberately NOT an MXU dot: C = 8 << 128 contraction width.)
    class_ids = jax.lax.broadcasted_iota(jnp.int32, x.shape, 0)
    x_true = jnp.sum(jnp.where(class_ids == lbl[None, ...], x, 0.0), axis=0)   # (S, 128)

    log_pt = (x_true - m) - jnp.log(denom)   # (S, 128)
    pt = jnp.exp(log_pt)                     # (S, 128)
    alpha_t = jnp.where(lbl == 1, jnp.float32(ALPHA), jnp.float32(1.0 - ALPHA))
    omp = 1.0 - pt
    # TODO(synk): gamma is specialized to the module default 2.0 (explicit square);
    # a general float gamma would need a pow / exp-log pair here.
    loss = -alpha_t * (omp * omp) * log_pt   # (S, 128) dense

    s = loss.shape[0]

    def _fold(v):
        # (S, 128) -> (8, 128) partial sums; layout-preserving reshape + pure VPU adds.
        return jnp.sum(v.reshape(s // _SUBLANES, _SUBLANES, _LANES), axis=0)

    start = (core * tiles_per_core + t) * tile_n   # first sample covered by this tile

    # Full tiles: plain accumulate, no mask work.
    @pl.when(start + tile_n <= n)
    def _full():
        out_ref[...] += _fold(loss)

    # Ragged tail tile (at most one globally): mask out the padded samples.
    @pl.when(jnp.logical_and(start < n, start + tile_n > n))
    def _tail():
        row = jax.lax.broadcasted_iota(jnp.int32, loss.shape, 0)
        lane = jax.lax.broadcasted_iota(jnp.int32, loss.shape, 1)
        gidx = start + row * _LANES + lane
        out_ref[...] += _fold(jnp.where(gidx < n, loss, 0.0))

    # Fully padded tiles (start >= n) contribute nothing.


def weighted_focal_loss(logits, labels, *, tile_n=131072, num_cores=2):
    """logits: (N, C) float, labels: (N,) int -> scalar float32 mean focal loss.

    tile_n: samples per grid step.  131072 keeps double-buffered inputs at ~9.5 MiB
    of VMEM (safe on v5e/v6e/v7x) while moving ~4.5 MiB of HBM per step, far above
    the ~0.35 us per-step pipeline overhead.
    num_cores: leading 'parallel' grid axis; 2 shards the reduction across both
    TensorCores on v7x and is harmless on single-TC v5e/v6e.
    """
    n, c = logits.shape

    # Lane/sublane-aligned tiling of the batch axis.
    tile_n = int(max(_SAMPLE_ALIGN, min(tile_n, 262144)) // _SAMPLE_ALIGN) * _SAMPLE_ALIGN
    n_align = pl.cdiv(n, _SAMPLE_ALIGN) * _SAMPLE_ALIGN
    tile_n = min(tile_n, n_align)                 # never allocate tiles bigger than the problem
    num_tiles = pl.cdiv(n, tile_n)
    tiles_per_core = pl.cdiv(num_tiles, num_cores)
    total_tiles = num_cores * tiles_per_core
    n_pad = total_tiles * tile_n
    s = tile_n // _LANES                          # sublane rows per tile

    # Wrapper-side layout plumbing: classes -> leading axis, batch folded dense into
    # (rows, 128) so every per-sample intermediate fills whole vregs.
    # TODO(synk): ideally the upstream producer emits logits already as (C, N) (bf16 ok)
    # so this transpose/pad never materializes an extra HBM pass; kept here because this
    # script must be self-contained.
    x = jnp.pad(logits.astype(jnp.float32).T, ((0, 0), (0, n_pad - n)))
    x = x.reshape(c, n_pad // _LANES, _LANES)
    lbl = jnp.pad(labels.astype(jnp.int32), (0, n_pad - n)).reshape(n_pad // _LANES, _LANES)

    # VMEM budget: double-buffered logits (32 B/sample) + labels (4 B/sample) + slack.
    vmem_bytes = 2 * (c + 1) * 4 * tile_n + (2 << 20)
    vmem_limit = int(min(max(vmem_bytes, 16 << 20), 48 << 20))  # stay under v7x 64 MiB physical

    kernel = functools.partial(_focal_loss_kernel, n=n, tile_n=tile_n,
                               tiles_per_core=tiles_per_core)
    partial_sums = pl.pallas_call(
        kernel,
        out_shape=jax.ShapeDtypeStruct((num_cores * _SUBLANES, _LANES), jnp.float32),
        grid=(num_cores, tiles_per_core),
        in_specs=[
            pl.BlockSpec((c, s, _LANES), lambda core, t: (0, core * tiles_per_core + t, 0)),
            pl.BlockSpec((s, _LANES), lambda core, t: (core * tiles_per_core + t, 0)),
        ],
        out_specs=pl.BlockSpec((_SUBLANES, _LANES), lambda core, t: (core, 0)),
        compiler_params=pltpu.CompilerParams(
            dimension_semantics=("parallel", "arbitrary"),
            vmem_limit_bytes=vmem_limit),
    )(x, lbl)

    # Final cross-core / cross-lane reduce and the mean happen in the wrapper (tiny).
    return jnp.sum(partial_sums) * jnp.float32(1.0 / n)


def _reference(logits, labels):
    # Faithful to the PyTorch module (including the +1e-8 inside the log).
    probs = jax.nn.softmax(logits.astype(jnp.float32), axis=1)
    one_hot = jax.nn.one_hot(labels, logits.shape[1], dtype=jnp.float32)
    pt = jnp.sum(probs * one_hot, axis=1)
    alpha_t = jnp.where(labels == 1, ALPHA, 1.0 - ALPHA)
    loss = -alpha_t * (1.0 - pt) ** GAMMA * jnp.log(pt + EPS)
    return jnp.mean(loss)


if __name__ == "__main__":
    key = jax.random.PRNGKey(0)
    C = 8
    # class_weights is declared by the module's __init__ but never used by forward();
    # kept only for parity with the spec.
    class_weights = jnp.ones((C,), dtype=jnp.float32)  # unused by forward

    # Cases with tile_n=1024: (300) single ragged tile + one empty tile,
    # (2048) exactly two full tiles, (2500) multi-tile per core + ragged tail + empty tile.
    for n in (300, 2048, 2500):
        k_logits, k_labels, key = jax.random.split(key, 3)
        logits = jax.random.normal(k_logits, (n, C), dtype=jnp.float32)
        labels = jax.random.randint(k_labels, (n,), 0, C, dtype=jnp.int32)

        ref = np.asarray(_reference(logits, labels))
        out = np.asarray(jax.block_until_ready(
            weighted_focal_loss(logits, labels, tile_n=1024)))
        assert np.allclose(out, ref, rtol=1e-5, atol=1e-5), (n, out, ref)

    # Default (large) tile path: tile is capped to the padded problem size.
    k_logits, k_labels, key = jax.random.split(key, 3)
    logits = jax.random.normal(k_logits, (300, C), dtype=jnp.float32)
    labels = jax.random.randint(k_labels, (300,), 0, C, dtype=jnp.int32)
    out = np.asarray(jax.block_until_ready(weighted_focal_loss(logits, labels)))
    ref = np.asarray(_reference(logits, labels))
    assert np.allclose(out, ref, rtol=1e-5, atol=1e-5)

    print("KERNEL_OK")
</pallas_src>

<mosaic_0001>
module attributes {stable_mosaic.version = 11 : i64} {
  func.func @_focal_loss_kernel(%arg0: i32, %arg1: i32, %arg2: memref<8x8x128xf32, #tpu.memory_space<vmem>>, %arg3: memref<8x128xi32, #tpu.memory_space<vmem>>, %arg4: memref<8x128xf32, #tpu.memory_space<vmem>>) attributes {dimension_semantics = [#tpu.dimension_semantics<parallel>, #tpu.dimension_semantics<arbitrary>], iteration_bounds = array<i64: 2, 1>, scalar_prefetch = 0 : i64, scratch_operands = 0 : i64, tpu.core_type = #tpu.core_type<tc>, window_params = [{transform_indices = @transform_0, window_bounds = array<i64: 8, 8, 128>}, {transform_indices = @transform_1, window_bounds = array<i64: 8, 128>}, {transform_indices = @transform_2, window_bounds = array<i64: 8, 128>}]} {
    %c0_i32 = arith.constant 0 : i32
    %0 = arith.cmpi eq, %arg1, %c0_i32 : i32
    %1 = arith.extui %0 : i1 to i32
    %c0_i32_0 = arith.constant 0 : i32
    %2 = arith.cmpi ne, %1, %c0_i32_0 : i32
    scf.if %2 {
      %cst_19 = arith.constant 0.000000e+00 : f32
      %47 = vector.broadcast %cst_19 : f32 to vector<8x128xf32>
      %c0_20 = arith.constant 0 : index
      %c0_21 = arith.constant 0 : index
      %48 = vector.load %arg4[%c0_20, %c0_21] : memref<8x128xf32, #tpu.memory_space<vmem>>, vector<8x128xf32>
      tpu.vector_store %arg4[%c0_20, %c0_21], %47 {strides = array<i32>} : memref<8x128xf32, #tpu.memory_space<vmem>>, vector<8x128xf32>,
    } else {
    }
    %c0 = arith.constant 0 : index
    %c0_1 = arith.constant 0 : index
    %c0_2 = arith.constant 0 : index
    %3 = vector.load %arg2[%c0, %c0_1, %c0_2] : memref<8x8x128xf32, #tpu.memory_space<vmem>>, vector<8x8x128xf32>
    %c0_3 = arith.constant 0 : index
    %c0_4 = arith.constant 0 : index
    %4 = vector.load %arg3[%c0_3, %c0_4] : memref<8x128xi32, #tpu.memory_space<vmem>>, vector<8x128xi32>
    %cst = arith.constant dense<0xFF800000> : vector<8x128xf32>
    %5 = vector.multi_reduction <maximumf>, %3, %cst [0] : vector<8x8x128xf32> to vector<8x128xf32>
    %6 = vector.shape_cast %5 : vector<8x128xf32> to vector<1x8x128xf32>
    %7 = vector.broadcast %6 : vector<1x8x128xf32> to vector<8x8x128xf32>
    %8 = arith.subf %3, %7 : vector<8x8x128xf32>
    %9 = math.exp %8 : vector<8x8x128xf32>
    %cst_5 = arith.constant dense<0.000000e+00> : vector<8x128xf32>
    %10 = vector.multi_reduction <add>, %9, %cst_5 [0] : vector<8x8x128xf32> to vector<8x128xf32>
    %11 = tpu.iota {dimensions = array<i32: 0>} : vector<8x8x128xi32>
    %12 = vector.shape_cast %4 : vector<8x128xi32> to vector<1x8x128xi32>
    %13 = vector.broadcast %12 : vector<1x8x128xi32> to vector<8x8x128xi32>
    %14 = arith.cmpi eq, %11, %13 : vector<8x8x128xi32>
    %cst_6 = arith.constant 0.000000e+00 : f32
    %15 = vector.broadcast %cst_6 : f32 to vector<8x8x128xf32>
    %16 = arith.select %14, %3, %15 : vector<8x8x128xi1>, vector<8x8x128xf32>
    %cst_7 = arith.constant dense<0.000000e+00> : vector<8x128xf32>
    %17 = vector.multi_reduction <add>, %16, %cst_7 [0] : vector<8x8x128xf32> to vector<8x128xf32>
    %18 = arith.subf %17, %5 : vector<8x128xf32>
    %19 = math.log %10 : vector<8x128xf32>
    %20 = arith.subf %18, %19 : vector<8x128xf32>
    %21 = math.exp %20 : vector<8x128xf32>
    %c1_i32 = arith.constant 1 : i32
    %22 = vector.broadcast %c1_i32 : i32 to vector<8x128xi32>
    %23 = arith.cmpi eq, %4, %22 : vector<8x128xi32>
    %cst_8 = arith.constant 7.500000e-01 : f32
    %cst_9 = arith.constant 2.500000e-01 : f32
    %24 = vector.broadcast %cst_8 : f32 to vector<8x128xf32>
    %25 = vector.broadcast %cst_9 : f32 to vector<8x128xf32>
    %26 = arith.select %23, %24, %25 : vector<8x128xi1>, vector<8x128xf32>
    %cst_10 = arith.constant 1.000000e+00 : f32
    %27 = vector.broadcast %cst_10 : f32 to vector<8x128xf32>
    %28 = arith.subf %27, %21 : vector<8x128xf32>
    %cst_11 = arith.constant 0.000000e+00 : f32
    %29 = vector.broadcast %cst_11 : f32 to vector<8x128xf32>
    %30 = arith.subf %29, %26 : vector<8x128xf32>
    %31 = arith.mulf %28, %28 : vector<8x128xf32>
    %32 = arith.mulf %30, %31 : vector<8x128xf32>
    %33 = arith.mulf %32, %20 : vector<8x128xf32>
    %c1_i32_12 = arith.constant 1 : i32
    %34 = arith.muli %arg0, %c1_i32_12 : i32
    %35 = arith.addi %34, %arg1 : i32
    %c1024_i32 = arith.constant 1024 : i32
    %36 = arith.muli %35, %c1024_i32 : i32
    %c1024_i32_13 = arith.constant 1024 : i32
    %37 = arith.addi %36, %c1024_i32_13 : i32
    %c300_i32 = arith.constant 300 : i32
    %38 = arith.cmpi sle, %37, %c300_i32 : i32
    %39 = arith.extui %38 : i1 to i32
    %c0_i32_14 = arith.constant 0 : i32
    %40 = arith.cmpi ne, %39, %c0_i32_14 : i32
    scf.if %40 {
      %c0_19 = arith.constant 0 : index
      %c0_20 = arith.constant 0 : index
      %47 = vector.load %arg4[%c0_19, %c0_20] : memref<8x128xf32, #tpu.memory_space<vmem>>, vector<8x128xf32>
      %48 = vector.shape_cast %33 : vector<8x128xf32> to vector<1x8x128xf32>
      %cst_21 = arith.constant dense<0.000000e+00> : vector<8x128xf32>
      %49 = vector.multi_reduction <add>, %48, %cst_21 [0] : vector<1x8x128xf32> to vector<8x128xf32>
      %50 = arith.addf %47, %49 : vector<8x128xf32>
      %c0_22 = arith.constant 0 : index
      %c0_23 = arith.constant 0 : index
      %51 = vector.load %arg4[%c0_22, %c0_23] : memref<8x128xf32, #tpu.memory_space<vmem>>, vector<8x128xf32>
      tpu.vector_store %arg4[%c0_22, %c0_23], %50 {strides = array<i32>} : memref<8x128xf32, #tpu.memory_space<vmem>>, vector<8x128xf32>,
    } else {
    }
    %c300_i32_15 = arith.constant 300 : i32
    %41 = arith.cmpi slt, %36, %c300_i32_15 : i32
    %c1024_i32_16 = arith.constant 1024 : i32
    %42 = arith.addi %36, %c1024_i32_16 : i32
    %c300_i32_17 = arith.constant 300 : i32
    %43 = arith.cmpi sgt, %42, %c300_i32_17 : i32
    %44 = arith.andi %41, %43 : i1
    %45 = arith.extui %44 : i1 to i32
    %c0_i32_18 = arith.constant 0 : i32
    %46 = arith.cmpi ne, %45, %c0_i32_18 : i32
    scf.if %46 {
      %47 = tpu.iota {dimensions = array<i32: 0>} : vector<8x128xi32>
      %48 = tpu.iota {dimensions = array<i32: 1>} : vector<8x128xi32>
      %c128_i32 = arith.constant 128 : i32
      %49 = vector.broadcast %c128_i32 : i32 to vector<8x128xi32>
      %50 = arith.muli %47, %49 : vector<8x128xi32>
      %51 = vector.broadcast %36 : i32 to vector<8x128xi32>
      %52 = arith.addi %51, %50 : vector<8x128xi32>
      %53 = arith.addi %52, %48 : vector<8x128xi32>
      %c0_19 = arith.constant 0 : index
      %c0_20 = arith.constant 0 : index
      %54 = vector.load %arg4[%c0_19, %c0_20] : memref<8x128xf32, #tpu.memory_space<vmem>>, vector<8x128xf32>
      %c300_i32_21 = arith.constant 300 : i32
      %55 = vector.broadcast %c300_i32_21 : i32 to vector<8x128xi32>
      %56 = arith.cmpi slt, %53, %55 : vector<8x128xi32>
      %cst_22 = arith.constant 0.000000e+00 : f32
      %57 = vector.broadcast %cst_22 : f32 to vector<8x128xf32>
      %58 = arith.select %56, %33, %57 : vector<8x128xi1>, vector<8x128xf32>
      %59 = vector.shape_cast %58 : vector<8x128xf32> to vector<1x8x128xf32>
      %cst_23 = arith.constant dense<0.000000e+00> : vector<8x128xf32>
      %60 = vector.multi_reduction <add>, %59, %cst_23 [0] : vector<1x8x128xf32> to vector<8x128xf32>
      %61 = arith.addf %54, %60 : vector<8x128xf32>
      %c0_24 = arith.constant 0 : index
      %c0_25 = arith.constant 0 : index
      %62 = vector.load %arg4[%c0_24, %c0_25] : memref<8x128xf32, #tpu.memory_space<vmem>>, vector<8x128xf32>
      tpu.vector_store %arg4[%c0_24, %c0_25], %61 {strides = array<i32>} : memref<8x128xf32, #tpu.memory_space<vmem>>, vector<8x128xf32>,
    } else {
    }
    return
  }
  func.func @transform_0(%arg0: i32, %arg1: i32) -> (i32, i32, i32) {
    %c1_i32 = arith.constant 1 : i32
    %0 = arith.muli %arg0, %c1_i32 : i32
    %1 = arith.addi %0, %arg1 : i32
    %c0_i32 = arith.constant 0 : i32
    %c0_i32_0 = arith.constant 0 : i32
    %c0_i32_1 = arith.constant 0 : i32
    return %c0_i32, %1, %c0_i32_0 : i32, i32, i32
  }
  func.func @transform_1(%arg0: i32, %arg1: i32) -> (i32, i32) {
    %c1_i32 = arith.constant 1 : i32
    %0 = arith.muli %arg0, %c1_i32 : i32
    %1 = arith.addi %0, %arg1 : i32
    %c0_i32 = arith.constant 0 : i32
    %c0_i32_0 = arith.constant 0 : i32
    return %1, %c0_i32 : i32, i32
  }
  func.func @transform_2(%arg0: i32, %arg1: i32) -> (i32, i32) {
    %c0_i32 = arith.constant 0 : i32
    %c0_i32_0 = arith.constant 0 : i32
    return %arg0, %c0_i32 : i32, i32
  }
}

</mosaic_0001>

<llo_original>
// kernel: tpu_custom_call.1
$region0: #{tpu_custom_call.1}
  #allocation0 [shape = 'u32[]', space=smem, size = 0x4, offset = 0x4, fixed_abs, tag = 'smem constant byte address 0x4 - core index']
  #allocation1 [shape = 'u32[144,128]{1,0:T(1,128)}', space=vmem, size = 0x12000, scoped, tag = 'internal scratch']
  %s0 = inlined_call_operand.hbm [shape: f32[8,16,128], index: 0, kind: input, shape index: {}]
  %s1 = inlined_call_operand.hbm [shape: s32[16,128], index: 1, kind: input, shape index: {}]
  %s2 = inlined_call_operand.hbm [shape: f32[16,128], index: 2, kind: output, shape index: {}]
  %s3 = sld [smem:[#allocation0]]
  $region61: #{tpu_custom_call.1} parent=0
    _
  %s5 = ssub.s32 1, %s3
  %s6 = scalar_select 0, %s5, %s3
  $region1: #{tpu_custom_call.1} parent=0
    #allocation2 [shape = 'u8[65536]{0}', space=vmem, size = 0x10000, scoped, tag = 'input window, operand 0']
    #allocation3 [shape = 's32[2]{0}', space=sflag, size = 0x8, scoped, tag = 'scoped memory for tpu_custom_call.1']
    #allocation4 [shape = 's32[2]{0}', space=sflag, size = 0x8, scoped, tag = 'scoped memory for tpu_custom_call.1']
    #allocation5 [shape = 'u8[8192]{0}', space=vmem, size = 0x2000, scoped, tag = 'input window, operand 1']
    #allocation6 [shape = 's32[2]{0}', space=sflag, size = 0x8, scoped, tag = 'scoped memory for tpu_custom_call.1']
    #allocation7 [shape = 'u8[8192]{0}', space=vmem, size = 0x2000, scoped, tag = 'output window, operand 0']
    %7 = vsyncpa [#allocation3], 0
    %s8 = scalar_lea.sflag [#allocation3], 1
    %9 = vsyncpa %s8, 0
    %10 = vsyncpa [#allocation6], 0
    %s11 = scalar_lea.sflag [#allocation6], 1
    %12 = vsyncpa %s11, 0
    %13 = vsyncpa [#allocation4], 0
    %s14 = scalar_lea.sflag [#allocation4], 1
    %15 = vsyncpa %s14, 0
    loop: start=0, step=1, limit=4
    $region2: #{tpu_custom_call.1} parent=1 // loop_pre_header
      _
    $region3: #{tpu_custom_call.1} parent=1 // loop_header
      %s17 = sphi 0, %s21
      %p18 = scmp.ge.s32.totalorder %s17, 4
      %s24 = sphi 0, %s36
      %s25 = sphi 0, %s32
      %s26 = sphi 0, %s24
      %s27 = sphi 0, %s25
      %s28 = sphi 0, %s26
      %s29 = sphi 0, %s27
      %s41 = sphi 0, %s43
      %s44 = sphi 0, %s41
      %s45 = sphi 0, %s44
      %s61 = sphi 0, %s45
      %s69 = sphi 0, %s71
      %s72 = sphi 0, %s69
      %s73 = sphi 0, %s72
      %s89 = sphi 0, %s73
      %s95 = sphi 0, %s97
      %s98 = sphi 0, %s95
      %s99 = sphi 0, %s98
      %s115 = sphi 0, %s99
    $region4: #{tpu_custom_call.1} parent=1 // loop_header_branch
      %20 = sbr.rel (%p18) target = $region8
    $region5: #{tpu_custom_call.1} parent=1 // loop_body
      %s22 = ssub.s32 %s17, 1
      %s23 = ssub.s32 %s17, 2
      %s30 = sadd.s32 1, %s25
      %p31 = scmp.ge.s32.totalorder %s30, 1
      %s32 = scalar_select %p31, 0, %s30
      %s33 = sadd.s32 1, %s24
      %s34 = scalar_select %p31, %s33, %s24
      %p35 = scmp.ge.s32.totalorder %s34, 2
      %s36 = scalar_select %p35, 0, %s34
      %s37 = sadd.s32 %s24, %s25
      %s38 = sadd.s32 %s36, %s32
      %s39 = ssub.s32 %s37, %s38
      %p40 = scmp.eq.s32.totalorder %s39, 0
      %s42 = sadd.s32 %s41, 1
      %s43 = scalar_select %p40, %s41, %s42
      %p46 = pneg %p40
      %p47 = scmp.eq.s32.totalorder %s17, 1
      %p48 = por %p46, %p47
      %p49 = scmp.ne.s32.totalorder %s41, %s44
      %p50 = scmp.eq.s32.totalorder %s17, 0
      %p51 = por %p49, %p50
      %p52 = scmp.ne.s32.totalorder %s41, %s44
      %p53 = scmp.eq.s32.totalorder %s22, 1
      %p54 = por %p52, %p53
      %p55 = scmp.ne.s32.totalorder %s44, %s45
      %p56 = scmp.eq.s32.totalorder %s22, 0
      %p57 = por %p55, %p56
      %p58 = scmp.ne.s32.totalorder %s44, %s45
      %p59 = scmp.eq.s32.totalorder %s23, 1
      %p60 = por %p58, %p59
      %p62 = scmp.ne.s32.totalorder %s45, %s61
      %p63 = scmp.eq.s32.totalorder %s23, 0
      %p64 = por %p62, %p63
      %s65 = sadd.s32 %s24, %s25
      %s66 = sadd.s32 %s36, %s32
      %s67 = ssub.s32 %s65, %s66
      %p68 = scmp.eq.s32.totalorder %s67, 0
      %s70 = sadd.s32 %s69, 1
      %s71 = scalar_select %p68, %s69, %s70
      %p74 = pneg %p68
      %p75 = scmp.eq.s32.totalorder %s17, 1
      %p76 = por %p74, %p75
      %p77 = scmp.ne.s32.totalorder %s69, %s72
      %p78 = scmp.eq.s32.totalorder %s17, 0
      %p79 = por %p77, %p78
      %p80 = scmp.ne.s32.totalorder %s69, %s72
      %p81 = scmp.eq.s32.totalorder %s22, 1
      %p82 = por %p80, %p81
      %p83 = scmp.ne.s32.totalorder %s72, %s73
      %p84 = scmp.eq.s32.totalorder %s22, 0
      %p85 = por %p83, %p84
      %p86 = scmp.ne.s32.totalorder %s72, %s73
      %p87 = scmp.eq.s32.totalorder %s23, 1
      %p88 = por %p86, %p87
      %p90 = scmp.ne.s32.totalorder %s73, %s89
      %p91 = scmp.eq.s32.totalorder %s23, 0
      %p92 = por %p90, %p91
      %s93 = ssub.s32 %s24, %s36
      %p94 = scmp.eq.s32.totalorder %s93, 0
      %s96 = sadd.s32 %s95, 1
      %s97 = scalar_select %p94, %s95, %s96
      %p100 = pneg %p94
      %p101 = scmp.eq.s32.totalorder %s17, 1
      %p102 = por %p100, %p101
      %p103 = scmp.ne.s32.totalorder %s95, %s98
      %p104 = scmp.eq.s32.totalorder %s17, 0
      %p105 = por %p103, %p104
      %p106 = scmp.ne.s32.totalorder %s95, %s98
      %p107 = scmp.eq.s32.totalorder %s22, 1
      %p108 = por %p106, %p107
      %p109 = scmp.ne.s32.totalorder %s98, %s99
      %p110 = scmp.eq.s32.totalorder %s22, 0
      %p111 = por %p109, %p110
      %p112 = scmp.ne.s32.totalorder %s98, %s99
      %p113 = scmp.eq.s32.totalorder %s23, 1
      %p114 = por %p112, %p113
      %p116 = scmp.ne.s32.totalorder %s99, %s115
      %p117 = scmp.eq.s32.totalorder %s23, 0
      %p118 = por %p116, %p117
      %p119 = scmp.le.s32.totalorder 1, %s17
      %p120 = scmp.lt.s32.totalorder %s17, 3
      %p121 = pnand %p119, %p120
      %p122 = pneg %p121
      // Predicated region
      $region9: #{tpu_custom_call.1} parent=5 // pred_check
        _
      $region10: #{tpu_custom_call.1} parent=5 // pred_check_branch
        %124 = sbr.rel (%p121) target = $region12
      $region11: #{tpu_custom_call.1} parent=5 // pred_region
        %s125 = ssub.s32 %s17, 1
      $region12: #{tpu_custom_call.1} parent=5 // pred_fallthru
        _
      %p126 = scmp.lt.s32.totalorder %s17, 2
      // Predicated region
      $region13: #{tpu_custom_call.1} parent=5 // pred_check
        %p127 = pneg %p126
      $region14: #{tpu_custom_call.1} parent=5 // pred_check_branch
        %129 = sbr.rel (%p127) target = $region16
      $region15: #{tpu_custom_call.1} parent=5 // pred_region
        // Predicated region
        $region17: #{tpu_custom_call.1} parent=15 // pred_check
          %p130 = pneg %p51
        $region18: #{tpu_custom_call.1} parent=15 // pred_check_branch
          %132 = sbr.rel (%p130) target = $region20
        $region19: #{tpu_custom_call.1} parent=15 // pred_region
          %s133 = sand.u32 %s41, 1
          %s134 = scalar_lea.sflag [#allocation3], %s133
          %s135 = sand.u32 %s41, 1
          %s136 = smul.addr %s135, 64
          %s137 = scalar_lea.vmem [#allocation2], %s136
          %s138 = sadd.s32 %s24, %s25
          %s140 = ssub.s32 1024, 1024
          %141 = vsyncadd %s134, %s140
          %s142 = smul.addr %s138, 128
          %s143 = scalar_lea.hbm %s0, %s142
          %s144 = sshll.u32 %s137, 4
          %s145 = int_to_ptr.vmem [resolvable:$true] %s144
          %150 = dma.hbm_to_vmem [thread:$0]  %s143, 1024, %s145, %s134, 256, 128, 8
        $region20: #{tpu_custom_call.1} parent=15 // pred_fallthru
          _
        // Predicated region
        $region21: #{tpu_custom_call.1} parent=15 // pred_check
          %p151 = pneg %p79
        $region22: #{tpu_custom_call.1} parent=15 // pred_check_branch
          %153 = sbr.rel (%p151) target = $region24
        $region23: #{tpu_custom_call.1} parent=15 // pred_region
          %s154 = sand.u32 %s69, 1
          %s155 = scalar_lea.sflag [#allocation6], %s154
          %s156 = sand.u32 %s69, 1
          %s157 = smul.addr %s156, 8
          %s158 = scalar_lea.vmem [#allocation5], %s157
          %s159 = sadd.s32 %s24, %s25
          %s161 = ssub.s32 128, 128
          %162 = vsyncadd %s155, %s161
          %s163 = smul.addr %s159, 128
          %s164 = scalar_lea.hbm %s1, %s163
          %s166 = sshll.u32 %s158, 4
          %s167 = int_to_ptr.vmem [resolvable:$true] %s166
          %169 = dma.hbm_to_vmem [thread:$0]  %s164, 128, %s167, %s155
        $region24: #{tpu_custom_call.1} parent=15 // pred_fallthru
          _
      $region16: #{tpu_custom_call.1} parent=5 // pred_fallthru
        _
      %p170 = scmp.le.s32.totalorder 1, %s17
      %p171 = scmp.lt.s32.totalorder %s17, 3
      %p172 = pnand %p170, %p171
      %p173 = pneg %p172
      // Predicated region
      $region25: #{tpu_custom_call.1} parent=5 // pred_check
        _
      $region26: #{tpu_custom_call.1} parent=5 // pred_check_branch
        %175 = sbr.rel (%p172) target = $region28
      $region27: #{tpu_custom_call.1} parent=5 // pred_region
        %s176 = ssub.s32 %s17, 1
        %s177 = sand.u32 %s44, 1
        %s178 = scalar_lea.sflag [#allocation3], %s177
        %s179 = sand.u32 %s44, 1
        %s180 = smul.addr %s179, 64
        %s181 = scalar_lea.vmem [#allocation2], %s180
        // Predicated region
        $region29: #{tpu_custom_call.1} parent=27 // pred_check
          %p182 = pneg %p57
        $region30: #{tpu_custom_call.1} parent=27 // pred_check_branch
          %184 = sbr.rel (%p182) target = $region32
        $region31: #{tpu_custom_call.1} parent=27 // pred_region
          %185 = dma.done %s178, 1024
        $region32: #{tpu_custom_call.1} parent=27 // pred_fallthru
          _
        %s186 = sand.u32 %s72, 1
        %s187 = scalar_lea.sflag [#allocation6], %s186
        %s188 = sand.u32 %s72, 1
        %s189 = smul.addr %s188, 8
        %s190 = scalar_lea.vmem [#allocation5], %s189
        // Predicated region
        $region33: #{tpu_custom_call.1} parent=27 // pred_check
          %p191 = pneg %p85
        $region34: #{tpu_custom_call.1} parent=27 // pred_check_branch
          %193 = sbr.rel (%p191) target = $region36
        $region35: #{tpu_custom_call.1} parent=27 // pred_region
          %194 = dma.done %s187, 128
        $region36: #{tpu_custom_call.1} parent=27 // pred_fallthru
          _
        %s195 = sand.u32 %s44, 1
        %s196 = scalar_lea.sflag [#allocation3], %s195
        %s197 = sand.u32 %s44, 1
        %s198 = smul.addr %s197, 64
        %s199 = scalar_lea.vmem [#allocation2], %s198
        %p200 = pneg %p57
        %p201 = pneg %p54
        %s202 = sand.u32 %s72, 1
        %s203 = scalar_lea.sflag [#allocation6], %s202
        %s204 = sand.u32 %s72, 1
        %s205 = smul.addr %s204, 8
        %s206 = scalar_lea.vmem [#allocation5], %s205
        %p207 = pneg %p85
        %p208 = pneg %p82
        %p209 = pneg %p111
        %p210 = pneg %p108
        %s211 = sand.u32 %s98, 1
        %s212 = scalar_lea.sflag [#allocation4], %s211
        %s213 = sand.u32 %s98, 1
        %s214 = smul.addr %s213, 8
        %s215 = scalar_lea.vmem [#allocation7], %s214
        %s216 = sadd.s32 %s26, %s27
        %s217 = sadd.s32 %s26, %s27
        %p218 = scmp.eq.s32.totalorder %s27, 0
        // Predicated region
        $region37: #{tpu_custom_call.1} parent=27 // pred_check
          %p219 = pneg %p218
        $region38: #{tpu_custom_call.1} parent=27 // pred_check_branch
          %221 = sbr.rel (%p219) target = $region40
        $region39: #{tpu_custom_call.1} parent=27 // pred_region
          %222 = vst [vmem:[%s215] sm:$0xff] 0.0
        $region40: #{tpu_custom_call.1} parent=27 // pred_fallthru
          _
        %v223 = vld [vmem:[%s181] sm:$0xff]
        %v224 = vld [vmem:[%s181 + $0x8] sm:$0xff]
        %v225 = vld [vmem:[%s181 + $0x10] sm:$0xff]
        %v226 = vld [vmem:[%s181 + $0x18] sm:$0xff]
        %v227 = vld [vmem:[%s181 + $0x20] sm:$0xff]
        %v228 = vld [vmem:[%s181 + $0x28] sm:$0xff]
        %v229 = vld [vmem:[%s181 + $0x30] sm:$0xff]
        %v230 = vld [vmem:[%s181 + $0x38] sm:$0xff]
        %v231 = vld [vmem:[%s190] sm:$0xff]
        %v232 = vmax.f32 %v223, %v227
        %v233 = vmax.f32 %v224, %v228
        %v234 = vmax.f32 %v225, %v229
        %v235 = vmax.f32 %v226, %v230
        %v236 = vmax.f32 %v232, %v233
        %v237 = vmax.f32 %v234, %v235
        %v238 = vmax.f32 %v236, %v237
        %v239 = vsub.f32 %v223, %v238
        %v240 = vsub.f32 %v224, %v238
        %v241 = vsub.f32 %v225, %v238
        %v242 = vsub.f32 %v226, %v238
        %v243 = vsub.f32 %v227, %v238
        %v244 = vsub.f32 %v228, %v238
        %v245 = vsub.f32 %v229, %v238
        %v246 = vsub.f32 %v230, %v238
        %v247 = vmul.f32 %v239, 1.442695
        %v248 = vpow.pop %v247
        %v249 = vmul.f32 %v240, 1.442695
        %v250 = vpow.pop %v249
        %v251 = vmul.f32 %v241, 1.442695
        %v252 = vpow.pop %v251
        %v253 = vmul.f32 %v242, 1.442695
        %v254 = vpow.pop %v253
        %v255 = vmul.f32 %v243, 1.442695
        %v256 = vpow.pop %v255
        %v257 = vmul.f32 %v244, 1.442695
        %v258 = vpow.pop %v257
        %v259 = vmul.f32 %v245, 1.442695
        %v260 = vpow.pop %v259
        %v261 = vmul.f32 %v246, 1.442695
        %v262 = vpow.pop %v261
        %v263 = vadd.f32 %v248, %v250
        %v264 = vadd.f32 %v263, %v252
        %v265 = vadd.f32 %v264, %v254
        %v266 = vadd.f32 %v265, %v256
        %v267 = vadd.f32 %v266, %v258
        %v268 = vadd.f32 %v267, %v260
        %v269 = vadd.f32 %v268, %v262
        %vm270 = vcmp.eq.s32.totalorder %v231, 0
        %vm271 = vcmp.eq.s32.totalorder %v231, 1
        %vm272 = vcmp.eq.s32.totalorder %v231, 2
        %vm273 = vcmp.eq.s32.totalorder %v231, 3
        %vm274 = vcmp.eq.s32.totalorder %v231, 4
        %vm275 = vcmp.eq.s32.totalorder %v231, 5
        %vm276 = vcmp.eq.s32.totalorder %v231, 6
        %vm277 = vcmp.eq.s32.totalorder %v231, 7
        %v278 = vsel %vm270, %v223, 0.0
        %v279 = vsel %vm271, %v224, 0.0
        %v280 = vsel %vm272, %v225, 0.0
        %v281 = vsel %vm273, %v226, 0.0
        %v282 = vsel %vm274, %v227, 0.0
        %v283 = vsel %vm275, %v228, 0.0
        %v284 = vsel %vm276, %v229, 0.0
        %v285 = vsel %vm277, %v230, 0.0
        %v286 = vadd.f32 %v278, %v279
        %v287 = vadd.f32 %v286, %v280
        %v288 = vadd.f32 %v287, %v281
        %v289 = vadd.f32 %v288, %v282
        %v290 = vadd.f32 %v289, %v283
        %v291 = vadd.f32 %v290, %v284
        %v292 = vadd.f32 %v291, %v285
        %v293 = vsub.f32 %v292, %v238
        %v294 = vlog2.pop %v269
        %v295 = vmul.f32 %v294, 0.6931472
        %v296 = vsub.f32 %v293, %v295
        %v297 = vmul.f32 %v296, 1.442695
        %v298 = vpow.pop %v297
        %v299 = vsel %vm271, 0.75, 0.25
        %v300 = vsub.f32 1.0, %v298
        %v301 = vsub.f32 0.0, %v299
        %v302 = vmul.f32 %v300, %v300
        %v303 = vmul.f32 %v301, %v302
        %v304 = vmul.f32 %v303, %v296
        %s305 = sadd.s32 %s26, %s27
        %s306 = smul.u32 %s305, 1024
        %s307 = sadd.s32 %s306, 1024
        %p308 = scmp.le.s32.totalorder %s307, 300
        // Predicated region
        $region41: #{tpu_custom_call.1} parent=27 // pred_check
          %p309 = pneg %p308
        $region42: #{tpu_custom_call.1} parent=27 // pred_check_branch
          %311 = sbr.rel (%p309) target = $region44
        $region43: #{tpu_custom_call.1} parent=27 // pred_region
          %v312 = vld [vmem:[%s215] sm:$0xff]
          %v313 = vadd.f32 %v304, 0.0
          %v314 = vadd.f32 %v312, %v313
          %315 = vst [vmem:[%s215] sm:$0xff] %v314
        $region44: #{tpu_custom_call.1} parent=27 // pred_fallthru
          _
        %p316 = scmp.lt.s32.totalorder %s306, 300
        %p317 = scmp.gt.s32.totalorder %s307, 300
        %p318 = pnand %p316, %p317
        %p319 = pneg %p318
        // Predicated region
        $region45: #{tpu_custom_call.1} parent=27 // pred_check
          _
        $region46: #{tpu_custom_call.1} parent=27 // pred_check_branch
          %321 = sbr.rel (%p318) target = $region48
        $region47: #{tpu_custom_call.1} parent=27 // pred_region
          %v322 = vlaneseq
          %v323 = vshrl.u32 %v322, 7
          %v324 = vlaneseq
          %v325 = vand.u32 %v324, 127
          %v326 = vmul.u32 %v323, 128
          %v327 = vstv %s306
          %v328 = vadd.s32 %v327, %v326
          %v329 = vadd.s32 %v328, %v325
          %v330 = vld [vmem:[%s215] sm:$0xff]
          %vm331 = vcmp.lt.s32.totalorder %v329, 300
          %v332 = vsel %vm331, %v304, 0.0
          %v333 = vadd.f32 %v332, 0.0
          %v334 = vadd.f32 %v330, %v333
          %335 = vst [vmem:[%s215] sm:$0xff] %v334
        $region48: #{tpu_custom_call.1} parent=27 // pred_fallthru
          _
        %s336 = sand.u32 %s98, 1
        %s337 = scalar_lea.sflag [#allocation4], %s336
        %s338 = sand.u32 %s98, 1
        %s339 = smul.addr %s338, 8
        %s340 = scalar_lea.vmem [#allocation7], %s339
        // Predicated region
        $region49: #{tpu_custom_call.1} parent=27 // pred_check
          %p341 = pneg %p108
        $region50: #{tpu_custom_call.1} parent=27 // pred_check_branch
          %343 = sbr.rel (%p341) target = $region52
        $region51: #{tpu_custom_call.1} parent=27 // pred_region
          %s345 = ssub.s32 128, 128
          %346 = vsyncadd %s337, %s345
          %s347 = smul.addr %s26, 128
          %s348 = scalar_lea.hbm %s2, %s347
          %s350 = sshll.u32 %s340, 4
          %s351 = int_to_ptr.vmem [resolvable:$true] %s350
          %353 = dma.vmem_to_hbm [thread:$0]  %s351, 128, %s348, %s337
        $region52: #{tpu_custom_call.1} parent=27 // pred_fallthru
          _
      $region28: #{tpu_custom_call.1} parent=5 // pred_fallthru
        _
      %p354 = scmp.le.s32.totalorder 2, %s17
      // Predicated region
      $region53: #{tpu_custom_call.1} parent=5 // pred_check
        %p355 = pneg %p354
      $region54: #{tpu_custom_call.1} parent=5 // pred_check_branch
        %357 = sbr.rel (%p355) target = $region56
      $region55: #{tpu_custom_call.1} parent=5 // pred_region
        %s358 = ssub.s32 %s17, 2
        // Predicated region
        $region57: #{tpu_custom_call.1} parent=55 // pred_check
          %p359 = pneg %p114
        $region58: #{tpu_custom_call.1} parent=55 // pred_check_branch
          %361 = sbr.rel (%p359) target = $region60
        $region59: #{tpu_custom_call.1} parent=55 // pred_region
          %s362 = sand.u32 %s99, 1
          %s363 = scalar_lea.sflag [#allocation4], %s362
          %s364 = sand.u32 %s99, 1
          %s365 = smul.addr %s364, 8
          %s366 = scalar_lea.vmem [#allocation7], %s365
          %367 = dma.done %s363, 128
        $region60: #{tpu_custom_call.1} parent=55 // pred_fallthru
          _
      $region56: #{tpu_custom_call.1} parent=5 // pred_fallthru
        _
    $region6: #{tpu_custom_call.1} parent=1 // loop_footer
      %s21 = sadd.s32 1, %s17
    $region7: #{tpu_custom_call.1} parent=1 // loop_footer_branch
      %16 = sbr.rel target = $region3
    $region8: #{tpu_custom_call.1} parent=1 // loop_exit
      _
    %368 = vsyncpa [#allocation3], 1
    %s369 = scalar_lea.sflag [#allocation3], 1
    %370 = vsyncpa %s369, 1
    %371 = vsyncpa [#allocation6], 1
    %s372 = scalar_lea.sflag [#allocation6], 1
    %373 = vsyncpa %s372, 1
    %374 = vsyncpa [#allocation4], 1
    %s375 = scalar_lea.sflag [#allocation4], 1
    %376 = vsyncpa %s375, 1

</llo_original>
